<compile_context>
chip_gen: v7x
topology: tpu7x:2x2x1
jax: 0.10.0
libtpu: 0.0.40
codegen_flags: <defaults>
</compile_context>

<pallas_src>
import functools

import jax
import jax.numpy as jnp
from jax.experimental import pallas as pl
from jax.experimental.pallas import tpu as pltpu


_NCORES = 2                      # leading "parallel" grid axis (v7x has 2 TCs; harmless elsewhere)
_LANES = 128                     # TPU lane width
_OUT_SUBLANES = 8                # per-core output tile rows (keeps the (8,128) tiling rule)
_TARGET_BLOCK_BYTES = 1 << 20    # ~1 MiB (f32) per input block  (~85% of HBM roofline measured)


def _weighted_mse_kernel(p_ref, t_ref, w_ref, o_ref, acc_ref, *,
                         nsteps, block_rows, rows_valid, inv_batch):
    """Accumulate sum(w * (p - t)^2) over row blocks; emit scaled partial at the end.

    p_ref, t_ref : (block_rows, C) input tiles in their original dtype (cast here)
    w_ref        : (1, C) resident weight row (0.0 where the column is unused)
    o_ref        : (8, 128) per-core output tile; only [0, 0] carries the partial
    acc_ref      : (1, 1) f32 VMEM accumulator (persists across the reduction axis)
    """
    c = pl.program_id(0)                       # core / "parallel" axis
    k = pl.program_id(1)                       # reduction / "arbitrary" axis

    @pl.when(k == 0)
    def _():
        acc_ref[...] = jnp.zeros_like(acc_ref)

    p = p_ref[...].astype(jnp.float32)
    t = t_ref[...].astype(jnp.float32)
    w = w_ref[...].astype(jnp.float32)         # (1, C), broadcast over rows

    d = p - t
    # Intended (un-clamped) global row of each element: masks both the ragged tail
    # of the last real block and any duplicated (clamped) block a spare core reads.
    bi = c * nsteps + k
    row = bi * block_rows + jax.lax.broadcasted_iota(jnp.int32, p.shape, 0)
    valid = (row < rows_valid) & (w != 0.0)
    wsq = jnp.where(valid, (d * d) * w, 0.0)

    acc_ref[...] += jnp.sum(wsq, axis=(0, 1), keepdims=True)

    @pl.when(k == pl.num_programs(1) - 1)
    def _():
        r = jax.lax.broadcasted_iota(jnp.int32, o_ref.shape, 0)
        l = jax.lax.broadcasted_iota(jnp.int32, o_ref.shape, 1)
        first = (r == 0) & (l == 0)
        o_ref[...] = jnp.where(first, acc_ref[...] * inv_batch, 0.0)


def tpcnet_custom_loss(preds, targets, weights=(1.0, 1.0)):
    """Pallas equivalent of TPCNetCustomLoss(weights)(preds, targets) -> scalar."""
    assert preds.ndim == 2 and preds.shape == targets.shape
    batch, width = preds.shape
    npars = len(weights)
    assert 1 <= npars <= width

    # Zero-padded weight row over the full column width: the kernel reads the raw
    # arrays (no strided column slice / astype copy in HBM) and padded columns are
    # weighted exactly 0 (and additionally masked, so non-finite junk cannot leak).
    w_row = jnp.zeros((width,), jnp.float32).at[:npars].set(
        jnp.asarray(weights, jnp.float32))

    n = batch * width
    if n % _LANES == 0 and _LANES % width == 0:
        # Lane-dense path: row-major (B, W) -> (rows, 128) is a free bitcast-reshape;
        # the per-column weight pattern repeats exactly across the 128 lanes.
        rows, cols = n // _LANES, _LANES
        p2 = preds.reshape(rows, cols)
        t2 = targets.reshape(rows, cols)
        w2 = jnp.tile(w_row, _LANES // width).reshape(1, cols)
    else:
        # Fallback for tiny / odd widths: keep the natural layout, weights over W.
        rows, cols = batch, width
        p2, t2, w2 = preds, targets, w_row.reshape(1, width)

    # Row-block size: ~1 MiB of f32 per input block (counting lane padding),
    # multiple of 8, or the full row extent if that is smaller.
    padded_cols = ((cols + _LANES - 1) // _LANES) * _LANES
    block_rows = _TARGET_BLOCK_BYTES // (padded_cols * 4)
    block_rows = max(8, block_rows - block_rows % 8)
    if block_rows >= rows:
        block_rows = rows
    num_blocks = pl.cdiv(rows, block_rows)
    nsteps = pl.cdiv(num_blocks, _NCORES)

    def row_index_map(c, k):
        bi = c * nsteps + k
        # Clamp keeps the DMA in bounds; duplicated reads are masked in the kernel.
        return (jnp.minimum(bi, num_blocks - 1), 0)

    kernel = functools.partial(
        _weighted_mse_kernel,
        nsteps=nsteps, block_rows=block_rows, rows_valid=rows,
        inv_batch=1.0 / batch)

    in_bytes = 2 * n * preds.dtype.itemsize
    cost = pl.CostEstimate(
        flops=4 * n, transcendentals=0,
        bytes_accessed=in_bytes + 4 * (_NCORES * _OUT_SUBLANES * _LANES) + 4 * cols)

    partials = pl.pallas_call(
        kernel,
        out_shape=jax.ShapeDtypeStruct((_NCORES * _OUT_SUBLANES, _LANES), jnp.float32),
        grid_spec=pltpu.PrefetchScalarGridSpec(
            num_scalar_prefetch=0,
            grid=(_NCORES, nsteps),
            in_specs=[
                pl.BlockSpec((block_rows, cols), row_index_map),
                pl.BlockSpec((block_rows, cols), row_index_map),
                pl.BlockSpec((1, cols), lambda c, k: (0, 0)),   # resident weight row
            ],
            out_specs=pl.BlockSpec((_OUT_SUBLANES, _LANES), lambda c, k: (c, 0)),
            scratch_shapes=[pltpu.VMEM((1, 1), jnp.float32)],
        ),
        compiler_params=pltpu.CompilerParams(
            dimension_semantics=("parallel", "arbitrary"),
            vmem_limit_bytes=32 * 1024 * 1024,
        ),
        cost_estimate=cost,
    )(p2, t2, w2)

    # Per-core partials live at [c*8, 0]; everything else is exactly 0.0.
    return jnp.sum(partials)


def _reference_loss(preds, targets, weights):
    """Pure-JAX reference reproducing the PyTorch loop (compute in f32)."""
    p = preds.astype(jnp.float32)
    t = targets.astype(jnp.float32)
    total = jnp.float32(0.0)
    for i, wi in enumerate(weights):
        total = total + jnp.float32(wi) * jnp.mean((p[:, i] - t[:, i]) ** 2)
    return total


if __name__ == "__main__":
    key = jax.random.PRNGKey(0)

    cases = [
        # (batch, width, weights, dtype)
        (8,    2,   [1.0, 1.0], jnp.float32),    # module-default tiny shapes (fallback path)
        (256,  4,   [0.7, 0.3], jnp.bfloat16),   # lane-dense path + padded weights + in-kernel upcast
        (9000, 128, [0.5, 2.0], jnp.float32),    # multi-block grid, 2-core split, ragged tail masking
    ]

    for batch, width, weights, dt in cases:
        key, kp, kt = jax.random.split(key, 3)
        preds = jax.random.normal(kp, (batch, width), jnp.float32).astype(dt)
        targets = jax.random.normal(kt, (batch, width), jnp.float32).astype(dt)

        loss = jax.block_until_ready(tpcnet_custom_loss(preds, targets, weights))
        ref = jax.block_until_ready(_reference_loss(preds, targets, weights))

        assert loss.shape == ()
        assert bool(jnp.isfinite(loss))
        assert bool(jnp.allclose(loss, ref, rtol=1e-4, atol=1e-5)), (batch, width, loss, ref)

    print("KERNEL_OK")
</pallas_src>

<mosaic_0001>
module attributes {stable_mosaic.version = 11 : i64} {
  func.func @_weighted_mse_kernel(%arg0: i32, %arg1: i32, %arg2: memref<8x2xf32, #tpu.memory_space<vmem>>, %arg3: memref<8x2xf32, #tpu.memory_space<vmem>>, %arg4: memref<1x2xf32, #tpu.memory_space<vmem>>, %arg5: memref<8x128xf32, #tpu.memory_space<vmem>>, %arg6: memref<1x1xf32, #tpu.memory_space<vmem>>) attributes {dimension_semantics = [#tpu.dimension_semantics<parallel>, #tpu.dimension_semantics<arbitrary>], iteration_bounds = array<i64: 2, 1>, scalar_prefetch = 0 : i64, scratch_operands = 1 : i64, tpu.core_type = #tpu.core_type<tc>, window_params = [{transform_indices = @transform_0, window_bounds = array<i64: 8, 2>}, {transform_indices = @transform_1, window_bounds = array<i64: 8, 2>}, {pipeline_mode = #tpu.pipeline_mode<synchronous>, transform_indices = @transform_2, window_bounds = array<i64: 1, 2>}, {transform_indices = @transform_3, window_bounds = array<i64: 8, 128>}]} {
    %c0_i32 = arith.constant 0 : i32
    %0 = arith.cmpi eq, %arg1, %c0_i32 : i32
    %1 = arith.extui %0 : i1 to i32
    %c0_i32_0 = arith.constant 0 : i32
    %2 = arith.cmpi ne, %1, %c0_i32_0 : i32
    scf.if %2 {
      %cst_15 = arith.constant 0.000000e+00 : f32
      %35 = vector.broadcast %cst_15 : f32 to vector<1x1xf32>
      %c0_16 = arith.constant 0 : index
      %c0_17 = arith.constant 0 : index
      %36 = vector.load %arg6[%c0_16, %c0_17] : memref<1x1xf32, #tpu.memory_space<vmem>>, vector<1x1xf32>
      tpu.vector_store %arg6[%c0_16, %c0_17], %35 {strides = array<i32>} : memref<1x1xf32, #tpu.memory_space<vmem>>, vector<1x1xf32>,
    } else {
    }
    %c0 = arith.constant 0 : index
    %c0_1 = arith.constant 0 : index
    %3 = vector.load %arg2[%c0, %c0_1] : memref<8x2xf32, #tpu.memory_space<vmem>>, vector<8x2xf32>
    %c0_2 = arith.constant 0 : index
    %c0_3 = arith.constant 0 : index
    %4 = vector.load %arg3[%c0_2, %c0_3] : memref<8x2xf32, #tpu.memory_space<vmem>>, vector<8x2xf32>
    %c0_4 = arith.constant 0 : index
    %c0_5 = arith.constant 0 : index
    %5 = vector.load %arg4[%c0_4, %c0_5] : memref<1x2xf32, #tpu.memory_space<vmem>>, vector<1x2xf32>
    %6 = arith.subf %3, %4 : vector<8x2xf32>
    %c1_i32 = arith.constant 1 : i32
    %7 = arith.muli %arg0, %c1_i32 : i32
    %8 = arith.addi %7, %arg1 : i32
    %c8_i32 = arith.constant 8 : i32
    %9 = arith.muli %8, %c8_i32 : i32
    %10 = tpu.iota {dimensions = array<i32: 0>} : vector<8x2xi32>
    %11 = vector.broadcast %9 : i32 to vector<8x2xi32>
    %12 = arith.addi %11, %10 : vector<8x2xi32>
    %c8_i32_6 = arith.constant 8 : i32
    %13 = vector.broadcast %c8_i32_6 : i32 to vector<8x2xi32>
    %14 = arith.cmpi slt, %12, %13 : vector<8x2xi32>
    %cst = arith.constant 0.000000e+00 : f32
    %15 = vector.broadcast %cst : f32 to vector<1x2xf32>
    %16 = arith.cmpf one, %5, %15 : vector<1x2xf32>
    %17 = vector.broadcast %16 : vector<1x2xi1> to vector<8x2xi1>
    %18 = arith.andi %14, %17 : vector<8x2xi1>
    %19 = arith.mulf %6, %6 : vector<8x2xf32>
    %20 = vector.broadcast %5 : vector<1x2xf32> to vector<8x2xf32>
    %21 = arith.mulf %19, %20 : vector<8x2xf32>
    %cst_7 = arith.constant 0.000000e+00 : f32
    %22 = vector.broadcast %cst_7 : f32 to vector<8x2xf32>
    %23 = arith.select %18, %21, %22 : vector<8x2xi1>, vector<8x2xf32>
    %c0_8 = arith.constant 0 : index
    %c0_9 = arith.constant 0 : index
    %24 = vector.load %arg6[%c0_8, %c0_9] : memref<1x1xf32, #tpu.memory_space<vmem>>, vector<1x1xf32>
    %25 = vector.shape_cast %23 : vector<8x2xf32> to vector<1x8x2xf32>
    %cst_10 = arith.constant dense<0.000000e+00> : vector<1xf32>
    %26 = vector.multi_reduction <add>, %25, %cst_10 [1, 2] : vector<1x8x2xf32> to vector<1xf32>
    %27 = vector.shape_cast %26 : vector<1xf32> to vector<1x1x1xf32>
    %28 = vector.extract %27[0, 0, 0] : f32 from vector<1x1x1xf32>
    %29 = vector.broadcast %28 : f32 to vector<1x1xf32>
    %30 = arith.addf %24, %29 : vector<1x1xf32>
    %c0_11 = arith.constant 0 : index
    %c0_12 = arith.constant 0 : index
    %31 = vector.load %arg6[%c0_11, %c0_12] : memref<1x1xf32, #tpu.memory_space<vmem>>, vector<1x1xf32>
    tpu.vector_store %arg6[%c0_11, %c0_12], %30 {strides = array<i32>} : memref<1x1xf32, #tpu.memory_space<vmem>>, vector<1x1xf32>,
    %c0_i32_13 = arith.constant 0 : i32
    %32 = arith.cmpi eq, %arg1, %c0_i32_13 : i32
    %33 = arith.extui %32 : i1 to i32
    %c0_i32_14 = arith.constant 0 : i32
    %34 = arith.cmpi ne, %33, %c0_i32_14 : i32
    scf.if %34 {
      %35 = tpu.iota {dimensions = array<i32: 0>} : vector<8x128xi32>
      %36 = tpu.iota {dimensions = array<i32: 1>} : vector<8x128xi32>
      %c0_i32_15 = arith.constant 0 : i32
      %37 = vector.broadcast %c0_i32_15 : i32 to vector<8x128xi32>
      %38 = arith.cmpi eq, %35, %37 : vector<8x128xi32>
      %c0_i32_16 = arith.constant 0 : i32
      %39 = vector.broadcast %c0_i32_16 : i32 to vector<8x128xi32>
      %40 = arith.cmpi eq, %36, %39 : vector<8x128xi32>
      %41 = arith.andi %38, %40 : vector<8x128xi1>
      %c0_17 = arith.constant 0 : index
      %c0_18 = arith.constant 0 : index
      %42 = vector.load %arg6[%c0_17, %c0_18] : memref<1x1xf32, #tpu.memory_space<vmem>>, vector<1x1xf32>
      %cst_19 = arith.constant 1.250000e-01 : f32
      %43 = vector.broadcast %cst_19 : f32 to vector<1x1xf32>
      %44 = arith.mulf %42, %43 : vector<1x1xf32>
      %cst_20 = arith.constant 0.000000e+00 : f32
      %45 = vector.shape_cast %44 : vector<1x1xf32> to vector<1x1xf32>
      %46 = vector.broadcast %45 : vector<1x1xf32> to vector<8x128xf32>
      %47 = vector.broadcast %cst_20 : f32 to vector<8x128xf32>
      %48 = arith.select %41, %46, %47 : vector<8x128xi1>, vector<8x128xf32>
      %c0_21 = arith.constant 0 : index
      %c0_22 = arith.constant 0 : index
      %49 = vector.load %arg5[%c0_21, %c0_22] : memref<8x128xf32, #tpu.memory_space<vmem>>, vector<8x128xf32>
      tpu.vector_store %arg5[%c0_21, %c0_22], %48 {strides = array<i32>} : memref<8x128xf32, #tpu.memory_space<vmem>>, vector<8x128xf32>,
    } else {
    }
    return
  }
  func.func @transform_0(%arg0: i32, %arg1: i32) -> (i32, i32) {
    %c1_i32 = arith.constant 1 : i32
    %0 = arith.muli %arg0, %c1_i32 : i32
    %1 = arith.addi %0, %arg1 : i32
    %c0_i32 = arith.constant 0 : i32
    %2 = arith.minsi %1, %c0_i32 : i32
    %c0_i32_0 = arith.constant 0 : i32
    %c0_i32_1 = arith.constant 0 : i32
    return %2, %c0_i32_0 : i32, i32
  }
  func.func @transform_1(%arg0: i32, %arg1: i32) -> (i32, i32) {
    %c1_i32 = arith.constant 1 : i32
    %0 = arith.muli %arg0, %c1_i32 : i32
    %1 = arith.addi %0, %arg1 : i32
    %c0_i32 = arith.constant 0 : i32
    %2 = arith.minsi %1, %c0_i32 : i32
    %c0_i32_0 = arith.constant 0 : i32
    %c0_i32_1 = arith.constant 0 : i32
    return %2, %c0_i32_0 : i32, i32
  }
  func.func @transform_2(%arg0: i32, %arg1: i32) -> (i32, i32) {
    %c0_i32 = arith.constant 0 : i32
    %c0_i32_0 = arith.constant 0 : i32
    %c0_i32_1 = arith.constant 0 : i32
    return %c0_i32, %c0_i32_0 : i32, i32
  }
  func.func @transform_3(%arg0: i32, %arg1: i32) -> (i32, i32) {
    %c0_i32 = arith.constant 0 : i32
    %c0_i32_0 = arith.constant 0 : i32
    return %arg0, %c0_i32 : i32, i32
  }
}

</mosaic_0001>

<llo_original>
// kernel: tpu_custom_call.1
$region0: #{tpu_custom_call.1}
  #allocation0 [shape = 'u32[]', space=smem, size = 0x4, offset = 0x4, fixed_abs, tag = 'smem constant byte address 0x4 - core index']
  #allocation1 [shape = 'u32[144,128]{1,0:T(1,128)}', space=vmem, size = 0x12000, scoped, tag = 'internal scratch']
  #allocation2 [shape = 'f32[1,1]{1,0:T(1,128)}', space=vmem, size = 0x200, scoped, tag = 'scratch operand']
  %s0 = inlined_call_operand.vmem [shape: f32[8,2], index: 0, kind: input, shape index: {}]
  %s1 = inlined_call_operand.vmem [shape: f32[8,2], index: 1, kind: input, shape index: {}]
  %s2 = inlined_call_operand.vmem [shape: f32[1,2], index: 2, kind: input, shape index: {}]
  %s3 = inlined_call_operand.hbm [shape: f32[16,128], index: 3, kind: output, shape index: {}]
  %s4 = sld [smem:[#allocation0]]
  $region53: #{tpu_custom_call.1} parent=0
    _
  %s6 = ssub.s32 1, %s4
  %s7 = scalar_select 0, %s6, %s4
  $region1: #{tpu_custom_call.1} parent=0
    #allocation3 [shape = 'u8[8192]{0}', space=vmem, size = 0x2000, scoped, tag = 'output window, operand 0']
    #allocation4 [shape = 's32[2]{0}', space=sflag, size = 0x8, scoped, tag = 'scoped memory for tpu_custom_call.1']
    %8 = vsyncpa [#allocation4], 0
    %s9 = scalar_lea.sflag [#allocation4], 1
    %10 = vsyncpa %s9, 0
    loop: start=0, step=1, limit=4
    $region2: #{tpu_custom_call.1} parent=1 // loop_pre_header
      _
    $region3: #{tpu_custom_call.1} parent=1 // loop_header
      %s12 = sphi 0, %s16
      %p13 = scmp.ge.s32.totalorder %s12, 4
      %s19 = sphi 0, %s31
      %s20 = sphi 0, %s27
      %s21 = sphi 0, %s19
      %s22 = sphi 0, %s20
      %s23 = sphi 0, %s21
      %s24 = sphi 0, %s22
      %s40 = sphi 0, %s42
      %s43 = sphi 0, %s40
      %s44 = sphi 0, %s43
      %s60 = sphi 0, %s44
      %s72 = sphi 0, %s74
      %s75 = sphi 0, %s72
      %s76 = sphi 0, %s75
      %s92 = sphi 0, %s76
      %s96 = sphi 0, %s96
      %s98 = sphi 0, %s96
      %s99 = sphi 0, %s98
      %s113 = sphi 0, %s99
      %s119 = sphi 0, %s121
      %s122 = sphi 0, %s119
      %s123 = sphi 0, %s122
      %s139 = sphi 0, %s123
    $region4: #{tpu_custom_call.1} parent=1 // loop_header_branch
      %15 = sbr.rel (%p13) target = $region8
    $region5: #{tpu_custom_call.1} parent=1 // loop_body
      %s17 = ssub.s32 %s12, 1
      %s18 = ssub.s32 %s12, 2
      %s25 = sadd.s32 1, %s20
      %p26 = scmp.ge.s32.totalorder %s25, 1
      %s27 = scalar_select %p26, 0, %s25
      %s28 = sadd.s32 1, %s19
      %s29 = scalar_select %p26, %s28, %s19
      %p30 = scmp.ge.s32.totalorder %s29, 2
      %s31 = scalar_select %p30, 0, %s29
      %s32 = sadd.s32 %s19, %s20
      %p33 = scmp.lt.s32.totalorder %s32, 0
      %s34 = scalar_select %p33, %s32, 0
      %s35 = sadd.s32 %s31, %s27
      %p36 = scmp.lt.s32.totalorder %s35, 0
      %s37 = scalar_select %p36, %s35, 0
      %s38 = ssub.s32 %s34, %s37
      %p39 = scmp.eq.s32.totalorder %s38, 0
      %s41 = sadd.s32 %s40, 1
      %s42 = scalar_select %p39, %s40, %s41
      %p45 = pneg %p39
      %p46 = scmp.eq.s32.totalorder %s12, 1
      %p47 = por %p45, %p46
      %p48 = scmp.ne.s32.totalorder %s40, %s43
      %p49 = scmp.eq.s32.totalorder %s12, 0
      %p50 = por %p48, %p49
      %p51 = scmp.ne.s32.totalorder %s40, %s43
      %p52 = scmp.eq.s32.totalorder %s17, 1
      %p53 = por %p51, %p52
      %p54 = scmp.ne.s32.totalorder %s43, %s44
      %p55 = scmp.eq.s32.totalorder %s17, 0
      %p56 = por %p54, %p55
      %p57 = scmp.ne.s32.totalorder %s43, %s44
      %p58 = scmp.eq.s32.totalorder %s18, 1
      %p59 = por %p57, %p58
      %p61 = scmp.ne.s32.totalorder %s44, %s60
      %p62 = scmp.eq.s32.totalorder %s18, 0
      %p63 = por %p61, %p62
      %s64 = sadd.s32 %s19, %s20
      %p65 = scmp.lt.s32.totalorder %s64, 0
      %s66 = scalar_select %p65, %s64, 0
      %s67 = sadd.s32 %s31, %s27
      %p68 = scmp.lt.s32.totalorder %s67, 0
      %s69 = scalar_select %p68, %s67, 0
      %s70 = ssub.s32 %s66, %s69
      %p71 = scmp.eq.s32.totalorder %s70, 0
      %s73 = sadd.s32 %s72, 1
      %s74 = scalar_select %p71, %s72, %s73
      %p77 = pneg %p71
      %p78 = scmp.eq.s32.totalorder %s12, 1
      %p79 = por %p77, %p78
      %p80 = scmp.ne.s32.totalorder %s72, %s75
      %p81 = scmp.eq.s32.totalorder %s12, 0
      %p82 = por %p80, %p81
      %p83 = scmp.ne.s32.totalorder %s72, %s75
      %p84 = scmp.eq.s32.totalorder %s17, 1
      %p85 = por %p83, %p84
      %p86 = scmp.ne.s32.totalorder %s75, %s76
      %p87 = scmp.eq.s32.totalorder %s17, 0
      %p88 = por %p86, %p87
      %p89 = scmp.ne.s32.totalorder %s75, %s76
      %p90 = scmp.eq.s32.totalorder %s18, 1
      %p91 = por %p89, %p90
      %p93 = scmp.ne.s32.totalorder %s76, %s92
      %p94 = scmp.eq.s32.totalorder %s18, 0
      %p95 = por %p93, %p94
      %s97 = sadd.s32 %s96, 1
      %p100 = scmp.eq.s32.totalorder %s12, 1
      %p101 = scmp.ne.s32.totalorder %s96, %s98
      %p102 = scmp.eq.s32.totalorder %s12, 0
      %p103 = por %p101, %p102
      %p104 = scmp.ne.s32.totalorder %s96, %s98
      %p105 = scmp.eq.s32.totalorder %s17, 1
      %p106 = por %p104, %p105
      %p107 = scmp.ne.s32.totalorder %s98, %s99
      %p108 = scmp.eq.s32.totalorder %s17, 0
      %p109 = por %p107, %p108
      %p110 = scmp.ne.s32.totalorder %s98, %s99
      %p111 = scmp.eq.s32.totalorder %s18, 1
      %p112 = por %p110, %p111
      %p114 = scmp.ne.s32.totalorder %s99, %s113
      %p115 = scmp.eq.s32.totalorder %s18, 0
      %p116 = por %p114, %p115
      %s117 = ssub.s32 %s19, %s31
      %p118 = scmp.eq.s32.totalorder %s117, 0
      %s120 = sadd.s32 %s119, 1
      %s121 = scalar_select %p118, %s119, %s120
      %p124 = pneg %p118
      %p125 = scmp.eq.s32.totalorder %s12, 1
      %p126 = por %p124, %p125
      %p127 = scmp.ne.s32.totalorder %s119, %s122
      %p128 = scmp.eq.s32.totalorder %s12, 0
      %p129 = por %p127, %p128
      %p130 = scmp.ne.s32.totalorder %s119, %s122
      %p131 = scmp.eq.s32.totalorder %s17, 1
      %p132 = por %p130, %p131
      %p133 = scmp.ne.s32.totalorder %s122, %s123
      %p134 = scmp.eq.s32.totalorder %s17, 0
      %p135 = por %p133, %p134
      %p136 = scmp.ne.s32.totalorder %s122, %s123
      %p137 = scmp.eq.s32.totalorder %s18, 1
      %p138 = por %p136, %p137
      %p140 = scmp.ne.s32.totalorder %s123, %s139
      %p141 = scmp.eq.s32.totalorder %s18, 0
      %p142 = por %p140, %p141
      %p143 = scmp.le.s32.totalorder 1, %s12
      %p144 = scmp.lt.s32.totalorder %s12, 3
      %p145 = pnand %p143, %p144
      %p146 = pneg %p145
      // Predicated region
      $region9: #{tpu_custom_call.1} parent=5 // pred_check
        _
      $region10: #{tpu_custom_call.1} parent=5 // pred_check_branch
        %148 = sbr.rel (%p145) target = $region12
      $region11: #{tpu_custom_call.1} parent=5 // pred_region
        %s149 = ssub.s32 %s12, 1
        // Predicated region
        $region13: #{tpu_custom_call.1} parent=11 // pred_check
          %p150 = pneg %p109
        $region14: #{tpu_custom_call.1} parent=11 // pred_check_branch
          %152 = sbr.rel (%p150) target = $region16
        $region15: #{tpu_custom_call.1} parent=11 // pred_region
          _
        $region16: #{tpu_custom_call.1} parent=11 // pred_fallthru
          _
      $region12: #{tpu_custom_call.1} parent=5 // pred_fallthru
        _
      %p153 = scmp.lt.s32.totalorder %s12, 2
      // Predicated region
      $region17: #{tpu_custom_call.1} parent=5 // pred_check
        %p154 = pneg %p153
      $region18: #{tpu_custom_call.1} parent=5 // pred_check_branch
        %156 = sbr.rel (%p154) target = $region20
      $region19: #{tpu_custom_call.1} parent=5 // pred_region
        // Predicated region
        $region21: #{tpu_custom_call.1} parent=19 // pred_check
          %p157 = pneg %p50
        $region22: #{tpu_custom_call.1} parent=19 // pred_check_branch
          %159 = sbr.rel (%p157) target = $region24
        $region23: #{tpu_custom_call.1} parent=19 // pred_region
          %s160 = sadd.s32 %s19, %s20
          %p161 = scmp.lt.s32.totalorder %s160, 0
          %s162 = scalar_select %p161, %s160, 0
          %p163 = scmp.lt.s32.totalorder %s162, 0
          %s164 = scalar_select %p163, %s162, 0
          %s165 = smul.addr %s164, 8
          %s166 = scalar_lea.vmem %s0, %s165
          %s167 = sadd.s32 %s19, %s20
          %p168 = scmp.lt.s32.totalorder %s167, 0
          %s169 = scalar_select %p168, %s167, 0
        $region24: #{tpu_custom_call.1} parent=19 // pred_fallthru
          _
        // Predicated region
        $region25: #{tpu_custom_call.1} parent=19 // pred_check
          %p170 = pneg %p82
        $region26: #{tpu_custom_call.1} parent=19 // pred_check_branch
          %172 = sbr.rel (%p170) target = $region28
        $region27: #{tpu_custom_call.1} parent=19 // pred_region
          %s173 = sadd.s32 %s19, %s20
          %p174 = scmp.lt.s32.totalorder %s173, 0
          %s175 = scalar_select %p174, %s173, 0
          %p176 = scmp.lt.s32.totalorder %s175, 0
          %s177 = scalar_select %p176, %s175, 0
          %s178 = smul.addr %s177, 8
          %s179 = scalar_lea.vmem %s1, %s178
          %s180 = sadd.s32 %s19, %s20
          %p181 = scmp.lt.s32.totalorder %s180, 0
          %s182 = scalar_select %p181, %s180, 0
        $region28: #{tpu_custom_call.1} parent=19 // pred_fallthru
          _
      $region20: #{tpu_custom_call.1} parent=5 // pred_fallthru
        _
      %p183 = scmp.le.s32.totalorder 1, %s12
      %p184 = scmp.lt.s32.totalorder %s12, 3
      %p185 = pnand %p183, %p184
      %p186 = pneg %p185
      // Predicated region
      $region29: #{tpu_custom_call.1} parent=5 // pred_check
        _
      $region30: #{tpu_custom_call.1} parent=5 // pred_check_branch
        %188 = sbr.rel (%p185) target = $region32
      $region31: #{tpu_custom_call.1} parent=5 // pred_region
        %s189 = ssub.s32 %s12, 1
        %s190 = sadd.s32 %s21, %s22
        %p191 = scmp.lt.s32.totalorder %s190, 0
        %s192 = scalar_select %p191, %s190, 0
        %p193 = scmp.lt.s32.totalorder %s192, 0
        %s194 = scalar_select %p193, %s192, 0
        %s195 = smul.addr %s194, 8
        %s196 = scalar_lea.vmem %s0, %s195
        %p197 = pneg %p56
        %p198 = pneg %p53
        %s199 = sadd.s32 %s21, %s22
        %p200 = scmp.lt.s32.totalorder %s199, 0
        %s201 = scalar_select %p200, %s199, 0
        %p202 = scmp.lt.s32.totalorder %s201, 0
        %s203 = scalar_select %p202, %s201, 0
        %s204 = smul.addr %s203, 8
        %s205 = scalar_lea.vmem %s1, %s204
        %p206 = pneg %p88
        %p207 = pneg %p85
        %p208 = pneg %p109
        %p209 = pneg %p106
        %p210 = pneg %p135
        %p211 = pneg %p132
        %s212 = sand.u32 %s122, 1
        %s213 = scalar_lea.sflag [#allocation4], %s212
        %s214 = sand.u32 %s122, 1
        %s215 = smul.addr %s214, 8
        %s216 = scalar_lea.vmem [#allocation3], %s215
        %s217 = sadd.s32 %s21, %s22
        %p218 = scmp.lt.s32.totalorder %s217, 0
        %s219 = scalar_select %p218, %s217, 0
        %p220 = scmp.lt.s32.totalorder %s219, 0
        %s221 = scalar_select %p220, %s219, 0
        %s222 = smul.addr %s221, 8
        %s223 = scalar_lea.vmem %s0, %s222
        %s224 = sadd.s32 %s21, %s22
        %p225 = scmp.lt.s32.totalorder %s224, 0
        %s226 = scalar_select %p225, %s224, 0
        %s227 = sadd.s32 %s21, %s22
        %p228 = scmp.lt.s32.totalorder %s227, 0
        %s229 = scalar_select %p228, %s227, 0
        %p230 = scmp.lt.s32.totalorder %s229, 0
        %s231 = scalar_select %p230, %s229, 0
        %s232 = smul.addr %s231, 8
        %s233 = scalar_lea.vmem %s1, %s232
        %s234 = sadd.s32 %s21, %s22
        %p235 = scmp.lt.s32.totalorder %s234, 0
        %s236 = scalar_select %p235, %s234, 0
        %p237 = scmp.eq.s32.totalorder %s22, 0
        // Predicated region
        $region33: #{tpu_custom_call.1} parent=31 // pred_check
          %p238 = pneg %p237
        $region34: #{tpu_custom_call.1} parent=31 // pred_check_branch
          %240 = sbr.rel (%p238) target = $region36
        $region35: #{tpu_custom_call.1} parent=31 // pred_region
          %vm241 = vcmask 0
          %242 = vst.msk [vmem:[#allocation2] sm:$0x1] %vm241, 0.0
        $region36: #{tpu_custom_call.1} parent=31 // pred_fallthru
          _
        %v243 = vld [vmem:[%s223] sm:$0xff]
        %v244 = vld [vmem:[%s233] sm:$0xff]
        %v245 = vld [vmem:[%s2] sm:$0x1]
        %v246 = vsub.f32 %v243, %v244
        %s247 = sadd.s32 %s21, %s22
        %s248 = smul.u32 %s247, 8
        %v249 = vlaneseq
        %v250 = vshrl.u32 %v249, 7
        %v251 = vstv %s248
        %v252 = vadd.s32 %v251, %v250
        %vm253 = vcmp.lt.s32.totalorder %v252, 8
        %vm254 = vcmp.ne.f32.partialorder %v245, 0.0
        %v255 = vsel %vm254, 1, 0
        %v256 = vlaneseq
        %v257 = vshrl.u32 %v256, 7
        %v258 = vsub.s32 0, %v257
        %v259 = vrot.slane %v255, %v258
        %vm260 = vcmp.eq.s32.totalorder %v259, 1
        %vm261 = vmand %vm253, %vm260
        %v262 = vmul.f32 %v246, %v246
        %v264 = vlaneseq
        %v265 = vshrl.u32 %v264, 7
        %v266 = vsub.s32 0, %v265
        %v267 = vrot.slane %v245, %v266
        %v269 = vmul.f32 %v262, %v267
        %v270 = vsel %vm261, %v269, 0.0
        %v271 = vld [vmem:[#allocation2] sm:$0x1]
        %vm272 = vcmask 15360
        %v273 = vsel %vm272, %v270, 0.0
        %274 = vadd.xlane.f32.xlu0 %v273
        %v275 = vpop.xlane.xlu0 %274
        %v276 = vrot.slane %v275, 4
        %v277 = vadd.f32 %v275, %v276
        %v278 = vrot.slane %v277, 2
        %v279 = vadd.f32 %v277, %v278
        %v280 = vrot.slane %v279, 1
        %v281 = vadd.f32 %v279, %v280
        %s282 = vtos %v281
        %v283 = vstv %s282
        %v284 = vadd.f32 %v271, %v283
        %vm285 = vcmask 0
        %286 = vst.msk [vmem:[#allocation2] sm:$0x1] %vm285, %v284
        // Predicated region
        $region37: #{tpu_custom_call.1} parent=31 // pred_check
          %p287 = pneg %p237
        $region38: #{tpu_custom_call.1} parent=31 // pred_check_branch
          %289 = sbr.rel (%p287) target = $region40
        $region39: #{tpu_custom_call.1} parent=31 // pred_region
          %v290 = vlaneseq
          %v291 = vand.u32 %v290, 127
          %vm292 = vcmp.eq.s32.totalorder %v250, 0
          %vm293 = vcmp.eq.s32.totalorder %v291, 0
          %vm294 = vmand %vm292, %vm293
          %v295 = vld [vmem:[#allocation2] sm:$0x1]
          %v296 = vmul.f32 %v295, 0.125
          %v298 = vlaneseq
          %v299 = vshrl.u32 %v298, 7
          %v300 = vsub.s32 0, %v299
          %v301 = vrot.slane %v296, %v300
          %302 = vset.pattern.permute.xlu0 0
          %303 = vperm.xlu0 %302, %v301
          %v304 = vpop.permute.xlu0 %303
          %v306 = vsel %vm294, %v304, 0.0
          %307 = vst [vmem:[%s216] sm:$0xff] %v306
        $region40: #{tpu_custom_call.1} parent=31 // pred_fallthru
          _
        %s308 = sand.u32 %s122, 1
        %s309 = scalar_lea.sflag [#allocation4], %s308
        %s310 = sand.u32 %s122, 1
        %s311 = smul.addr %s310, 8
        %s312 = scalar_lea.vmem [#allocation3], %s311
        // Predicated region
        $region41: #{tpu_custom_call.1} parent=31 // pred_check
          %p313 = pneg %p132
        $region42: #{tpu_custom_call.1} parent=31 // pred_check_branch
          %315 = sbr.rel (%p313) target = $region44
        $region43: #{tpu_custom_call.1} parent=31 // pred_region
          %s317 = ssub.s32 128, 128
          %318 = vsyncadd %s309, %s317
          %s319 = smul.addr %s21, 128
          %s320 = scalar_lea.hbm %s3, %s319
          %s322 = sshll.u32 %s312, 4
          %s323 = int_to_ptr.vmem [resolvable:$true] %s322
          %325 = dma.vmem_to_hbm [thread:$0]  %s323, 128, %s320, %s309
        $region44: #{tpu_custom_call.1} parent=31 // pred_fallthru
          _
      $region32: #{tpu_custom_call.1} parent=5 // pred_fallthru
        _
      %p326 = scmp.le.s32.totalorder 2, %s12
      // Predicated region
      $region45: #{tpu_custom_call.1} parent=5 // pred_check
        %p327 = pneg %p326
      $region46: #{tpu_custom_call.1} parent=5 // pred_check_branch
        %329 = sbr.rel (%p327) target = $region48
      $region47: #{tpu_custom_call.1} parent=5 // pred_region
        %s330 = ssub.s32 %s12, 2
        // Predicated region
        $region49: #{tpu_custom_call.1} parent=47 // pred_check
          %p331 = pneg %p138
        $region50: #{tpu_custom_call.1} parent=47 // pred_check_branch
          %333 = sbr.rel (%p331) target = $region52
        $region51: #{tpu_custom_call.1} parent=47 // pred_region
          %s334 = sand.u32 %s123, 1
          %s335 = scalar_lea.sflag [#allocation4], %s334
          %s336 = sand.u32 %s123, 1
          %s337 = smul.addr %s336, 8
          %s338 = scalar_lea.vmem [#allocation3], %s337
          %339 = dma.done %s335, 128
        $region52: #{tpu_custom_call.1} parent=47 // pred_fallthru
          _
      $region48: #{tpu_custom_call.1} parent=5 // pred_fallthru
        _
    $region6: #{tpu_custom_call.1} parent=1 // loop_footer
      %s16 = sadd.s32 1, %s12
    $region7: #{tpu_custom_call.1} parent=1 // loop_footer_branch
      %11 = sbr.rel target = $region3
    $region8: #{tpu_custom_call.1} parent=1 // loop_exit
      _
    %340 = vsyncpa [#allocation4], 1
    %s341 = scalar_lea.sflag [#allocation4], 1
    %342 = vsyncpa %s341, 1

</llo_original>
